<compile_context>
chip_gen: v5e
topology: v5e:2x2
jax: 0.10.0
libtpu: 0.0.40
codegen_flags: <defaults>
</compile_context>

<pallas_src>
import functools

import jax
import jax.numpy as jnp
from jax import lax
from jax.experimental import pallas as pl
from jax.experimental.pallas import tpu as pltpu

# Per-block byte cap; double-buffered input + output is ~4x this, which stays
# well under every generation's scoped-VMEM default (16 MiB on v5e).
_MAX_BLOCK_BYTES = 2 * 1024 * 1024


def _normalize_kernel(x_ref, o_ref, *, power):
    # x_ref / o_ref: (block_n, D) blocks resident in VMEM.
    x = x_ref[...].astype(jnp.float32)  # load once, compute in f32

    if power == 2:
        # Fast path: sum of squares on the VPU, rsqrt on the EUP (its own
        # VLIW slot), then a broadcast multiply instead of per-element divide.
        ssq = jnp.sum(x * x, axis=-1, keepdims=True)
        inv = lax.rsqrt(ssq)
    else:
        if isinstance(power, int) and power >= 1:
            # x**p via repeated multiplication -> stays on the 4-wide VPU,
            # avoids exp(log(x)*p) transcendentals over the whole tile.
            xp = x
            for _ in range(int(power) - 1):
                xp = xp * x
        else:
            xp = jnp.power(x, power)
        s = jnp.sum(xp, axis=-1, keepdims=True)
        # Only this (block_n, 1)-sized root/reciprocal is transcendental.
        norm = jnp.power(s, 1.0 / power)
        inv = 1.0 / norm

    o_ref[...] = (x * inv).astype(o_ref.dtype)


def _normalize_2d(x: jax.Array, power, tile_n: int) -> jax.Array:
    """L_p normalize each row of a 2D (N, D) array (reduction over D)."""
    n, d = x.shape
    itemsize = jnp.dtype(x.dtype).itemsize
    sublane = 8 if itemsize >= 4 else (16 if itemsize == 2 else 32)

    # Clamp the row tile so a single block stays <= _MAX_BLOCK_BYTES.
    max_rows = max(sublane, _MAX_BLOCK_BYTES // max(1, d * itemsize))
    eff_tile = max(sublane, (min(tile_n, max_rows) // sublane) * sublane)

    if n <= eff_tile:
        # Single-block fast path: whole array as one VMEM block, one DMA in,
        # one DMA out, no pipeline per-step overhead.
        block_n = n
        grid = (1,)
    else:
        block_n = eff_tile
        grid = (pl.cdiv(n, block_n),)  # partial last block handled by Pallas

    kernel = functools.partial(_normalize_kernel, power=power)
    return pl.pallas_call(
        kernel,
        out_shape=jax.ShapeDtypeStruct((n, d), x.dtype),
        grid_spec=pltpu.PrefetchScalarGridSpec(
            num_scalar_prefetch=0,
            grid=grid,
            in_specs=[pl.BlockSpec((block_n, d), lambda i: (i, 0))],
            out_specs=pl.BlockSpec((block_n, d), lambda i: (i, 0)),
        ),
        compiler_params=pltpu.CompilerParams(
            dimension_semantics=("parallel",),
        ),
    )(x)


def normalize(x: jax.Array, power=2, *, tile_n: int = 1024) -> jax.Array:
    """Matches Normalize.forward: L_p normalization along dim 1 of `x`."""
    if x.ndim < 2:
        raise ValueError("Normalize expects an array with ndim >= 2")
    if x.ndim == 2:
        return _normalize_2d(x, power, tile_n)
    # General N-D case: move the reduction axis (dim 1) to the lane axis,
    # flatten the remaining axes into rows, normalize, and restore layout.
    perm = (0,) + tuple(range(2, x.ndim)) + (1,)
    inv_perm = [0] * x.ndim
    for i, p in enumerate(perm):
        inv_perm[p] = i
    xt = jnp.transpose(x, perm)
    out2 = _normalize_2d(xt.reshape(-1, xt.shape[-1]), power, tile_n)
    return jnp.transpose(out2.reshape(xt.shape), inv_perm)


def normalize_ref(x: jax.Array, power=2) -> jax.Array:
    # pure-JAX reference mirroring the PyTorch forward exactly
    norm = jnp.power(
        jnp.sum(jnp.power(x, power), axis=1, keepdims=True), 1.0 / power
    )
    return x / norm


if __name__ == "__main__":
    key = jax.random.PRNGKey(0)
    k1, k2, k3 = jax.random.split(key, 3)

    # 1) (N, C) feature vectors, p=2 -> single-block fast path.
    x1 = jax.random.normal(k1, (16, 128), dtype=jnp.float32)
    o1 = jax.block_until_ready(normalize(x1, power=2))
    r1 = normalize_ref(x1, power=2)
    assert o1.shape == x1.shape and o1.dtype == x1.dtype
    assert jnp.allclose(o1, r1, atol=1e-5, rtol=1e-5)

    # 2) Grid path with a partial last block (N=40, tile_n=16 -> 3 blocks),
    #    generic integer power p=3 (positive inputs so the reference is
    #    NaN-free, matching the torch module's behavior on these inputs).
    x2 = jnp.abs(jax.random.normal(k2, (40, 128), dtype=jnp.float32)) + 0.1
    o2 = jax.block_until_ready(normalize(x2, power=3, tile_n=16))
    r2 = normalize_ref(x2, power=3)
    assert jnp.allclose(o2, r2, atol=1e-5, rtol=1e-5)

    # 3) 4-D input (N, C, H, W): reduction over the channel axis, as in torch.
    x3 = jax.random.normal(k3, (2, 4, 8, 8), dtype=jnp.float32)
    o3 = jax.block_until_ready(normalize(x3, power=2))
    r3 = normalize_ref(x3, power=2)
    assert jnp.allclose(o3, r3, atol=1e-5, rtol=1e-5)

    print("KERNEL_OK")
</pallas_src>

<mosaic_0001>
module attributes {stable_mosaic.version = 11 : i64} {
  func.func @_normalize_kernel(%arg0: i32, %arg1: memref<16x128xf32, #tpu.memory_space<vmem>>, %arg2: memref<16x128xf32, #tpu.memory_space<vmem>>) attributes {dimension_semantics = [#tpu.dimension_semantics<parallel>], iteration_bounds = array<i64: 1>, scalar_prefetch = 0 : i64, scratch_operands = 0 : i64, tpu.core_type = #tpu.core_type<tc>, window_params = [{transform_indices = @transform_0, window_bounds = array<i64: 16, 128>}, {transform_indices = @transform_1, window_bounds = array<i64: 16, 128>}]} {
    %c0 = arith.constant 0 : index
    %c0_0 = arith.constant 0 : index
    %0 = vector.load %arg1[%c0, %c0_0] : memref<16x128xf32, #tpu.memory_space<vmem>>, vector<16x128xf32>
    %1 = arith.mulf %0, %0 : vector<16x128xf32>
    %cst = arith.constant dense<0.000000e+00> : vector<16xf32>
    %2 = vector.multi_reduction <add>, %1, %cst [1] : vector<16x128xf32> to vector<16xf32>
    %3 = vector.shape_cast %2 : vector<16xf32> to vector<16x1xf32>
    %4 = math.rsqrt %3 : vector<16x1xf32>
    %5 = vector.broadcast %4 : vector<16x1xf32> to vector<16x128xf32>
    %6 = arith.mulf %0, %5 : vector<16x128xf32>
    %c0_1 = arith.constant 0 : index
    %c0_2 = arith.constant 0 : index
    %7 = vector.load %arg2[%c0_1, %c0_2] : memref<16x128xf32, #tpu.memory_space<vmem>>, vector<16x128xf32>
    tpu.vector_store %arg2[%c0_1, %c0_2], %6 {strides = array<i32>} : memref<16x128xf32, #tpu.memory_space<vmem>>, vector<16x128xf32>,
    return
  }
  func.func @transform_0(%arg0: i32) -> (i32, i32) {
    %c0_i32 = arith.constant 0 : i32
    %c0_i32_0 = arith.constant 0 : i32
    return %arg0, %c0_i32 : i32, i32
  }
  func.func @transform_1(%arg0: i32) -> (i32, i32) {
    %c0_i32 = arith.constant 0 : i32
    %c0_i32_0 = arith.constant 0 : i32
    return %arg0, %c0_i32 : i32, i32
  }
}

</mosaic_0001>

<llo_original>
// kernel: tpu_custom_call.1
$region0: #{tpu_custom_call.1}
  #allocation0 [shape = 'u32[]', space=smem, size = 0x4, offset = 0x4, fixed_abs, tag = 'smem constant byte address 0x4 - core index']
  #allocation1 [shape = 'u32[72,128]{1,0:T(1,128)}', space=vmem, size = 0x9000, scoped, tag = 'internal scratch']
  %s0 = inlined_call_operand.hbm [shape: f32[16,128], index: 0, kind: input, shape index: {}]
  %s1 = inlined_call_operand.hbm [shape: f32[16,128], index: 1, kind: output, shape index: {}]
  %s2 = sld [smem:[#allocation0]]
  $region18: #{tpu_custom_call.1} parent=0
    _
  %s4 = ssub.s32 1, %s2
  %s5 = scalar_select 0, %s4, %s2
  $region1: #{tpu_custom_call.1} parent=0
    #allocation2 [shape = 'u8[8192]{0}', space=vmem, size = 0x2000, scoped, tag = 'input window, operand 0, single buffered']
    #allocation3 [shape = 's32[1]{0}', space=sflag, size = 0x4, scoped, tag = 'scoped memory for tpu_custom_call.1']
    #allocation4 [shape = 's32[1]{0}', space=sflag, size = 0x4, scoped, tag = 'scoped memory for tpu_custom_call.1']
    #allocation5 [shape = 'u8[8192]{0}', space=vmem, size = 0x2000, scoped, tag = 'output window, operand 0, single buffered']
    %6 = vsyncpa [#allocation3], 0
    %7 = vsyncpa [#allocation4], 0
    // Predicated region
    $region2: #{tpu_custom_call.1} parent=1 // pred_check
      _
    $region3: #{tpu_custom_call.1} parent=1 // pred_check_branch
      %9 = sbr.rel (0) target = $region5
    $region4: #{tpu_custom_call.1} parent=1 // pred_region
      %11 = vsyncadd [#allocation3], 0
      %s12 = sshll.u32 %s0, 4
      %s13 = int_to_ptr.hbm [resolvable:$true] %s12
      %s14 = sshll.u32 [#allocation2], 4
      %s15 = int_to_ptr.vmem [resolvable:$true] %s14
      %20 = dma.hbm_to_vmem [thread:$0]  %s13, 256, %s15, [#allocation3], 128, 128, 8
    $region5: #{tpu_custom_call.1} parent=1 // pred_fallthru
      _
    // Predicated region
    $region6: #{tpu_custom_call.1} parent=1 // pred_check
      _
    $region7: #{tpu_custom_call.1} parent=1 // pred_check_branch
      %22 = sbr.rel (0) target = $region9
    $region8: #{tpu_custom_call.1} parent=1 // pred_region
      %24 = dma.done [#allocation3], 256
    $region9: #{tpu_custom_call.1} parent=1 // pred_fallthru
      _
    %v25 = vld [vmem:[#allocation2] sm:$0xff]
    %v26 = vld [vmem:[#allocation2 + $0x8] sm:$0xff]
    %v27 = vmul.f32 %v25, %v25
    %v28 = vmul.f32 %v26, %v26
    %29 = vadd.xlane.f32.xlu0 %v27
    %v30 = vpop.xlane.xlu0 %29
    %31 = vadd.xlane.f32.xlu0 %v28
    %v32 = vpop.xlane.xlu0 %31
    %v33 = vrsqrt.pop %v30
    %v34 = vmul.f32 %v33, %v30
    %v35 = vmul.f32 %v34, %v33
    %v36 = vmul.f32 0.5, %v35
    %v37 = vsub.f32 1.5, %v36
    %v38 = vmul.f32 %v33, %v37
    %vm39 = vweird.f32 %v30
    %vm40 = vweird.f32 %v33
    %vm41 = vmor %vm39, %vm40
    %v42 = vsel %vm41, %v33, %v38
    %v43 = vrsqrt.pop %v32
    %v44 = vmul.f32 %v43, %v32
    %v45 = vmul.f32 %v44, %v43
    %v46 = vmul.f32 0.5, %v45
    %v47 = vsub.f32 1.5, %v46
    %v48 = vmul.f32 %v43, %v47
    %vm49 = vweird.f32 %v32
    %vm50 = vweird.f32 %v43
    %vm51 = vmor %vm49, %vm50
    %v52 = vsel %vm51, %v43, %v48
    %v53 = vmul.f32 %v25, %v42
    %v54 = vmul.f32 %v26, %v52
    %55 = vst [vmem:[#allocation5] sm:$0xff] %v53
    %56 = vst [vmem:[#allocation5 + $0x8] sm:$0xff] %v54
    // Predicated region
    $region10: #{tpu_custom_call.1} parent=1 // pred_check
      _
    $region11: #{tpu_custom_call.1} parent=1 // pred_check_branch
      %58 = sbr.rel (0) target = $region13
    $region12: #{tpu_custom_call.1} parent=1 // pred_region
      %60 = vsyncadd [#allocation4], 0
      %s61 = sshll.u32 [#allocation5], 4
      %s62 = int_to_ptr.vmem [resolvable:$true] %s61
      %s63 = sshll.u32 %s1, 4
      %s64 = int_to_ptr.hbm [resolvable:$true] %s63
      %69 = dma.vmem_to_hbm [thread:$0]  %s62, 256, %s64, [#allocation4], 128, 128, 8
    $region13: #{tpu_custom_call.1} parent=1 // pred_fallthru
      _
    // Predicated region
    $region14: #{tpu_custom_call.1} parent=1 // pred_check
      _
    $region15: #{tpu_custom_call.1} parent=1 // pred_check_branch
      %71 = sbr.rel (0) target = $region17
    $region16: #{tpu_custom_call.1} parent=1 // pred_region
      %73 = dma.done [#allocation4], 256
    $region17: #{tpu_custom_call.1} parent=1 // pred_fallthru
      _
    %74 = vsyncpa [#allocation3], 1
    %75 = vsyncpa [#allocation4], 1

</llo_original>
